<compile_context>
chip_gen: v7x
topology: tpu7x:2x2x1
jax: 0.10.0
libtpu: 0.0.40
codegen_flags: <defaults>
</compile_context>

<pallas_src>
import functools

import jax
import jax.numpy as jnp
from jax.experimental import pallas as pl
from jax.experimental.pallas import tpu as pltpu

LANES = 128  # packed (di, dj, class) lane width -> unmasked full-block vector stores


# ----------------------------------------------------------------------------
# Fused forward kernel: conv head + patch embed + decoder + weighted-mean fusion
# ----------------------------------------------------------------------------
def _fused_kernel(x_ref, wc_ref, bc_ref, we_ref, be_ref, wd_ref, bd_ref, wgt_ref, out_ref):
    """All branches for one M-tile of tokens, entirely in VMEM.

    x_ref  : (TM, Kpad)      halo'd token tile, lane order (a, b, ch), zero-padded to Kpad
    wc_ref : (Kpad, 128)     "big" 3x3 conv weight; sub-position t's nc columns at lane t*nc
    bc_ref : (1, 128)        conv bias tiled per sub-position, zero-padded
    we_ref : (Kpad, hidden)  patch-embed weight, zero rows at halo / pad taps
    be_ref : (1, hidden)
    wd_ref : (hidden, 128)   linear decoder weight, packed (t*nc + c), zero-padded
    bd_ref : (1, 128)
    wgt_ref: (2,) SMEM       [w_cnn, w_trans]
    out_ref: (TM, 128)       fused output, packed (t*nc + c) on lanes
    """
    wc = wgt_ref[0] * 0.5          # fold the mean() into the per-branch scale, hoisted once
    wt = wgt_ref[1] * 0.5
    x = x_ref[...]

    # ---- CNN branch: entire 3x3 conv (padding=1) for all p*p sub-positions as ONE matmul ----
    cnn = jnp.dot(x, wc_ref[...], preferred_element_type=jnp.float32) + bc_ref[...]
    out_ref[...] = cnn * wc        # store now so only one (TM, 128) accumulator is ever live

    # ---- Transformer branch (stand-in): patch embed -> GELU -> linear decoder, ONE dot each ----
    emb = jnp.dot(x, we_ref[...], preferred_element_type=jnp.float32) + be_ref[...]
    # TODO(synk): jax.nn.gelu is the tanh approximation (PyTorch nn.GELU defaults to erf);
    #             accepted as part of the stand-in transformer branch semantics.
    emb = jax.nn.gelu(emb)
    dec = jnp.dot(emb, wd_ref[...], preferred_element_type=jnp.float32) + bd_ref[...]

    # ---- Fusion epilogue: mean(stack([x_cnn*w_cnn, x_trans*w_trans]), 0), single RMW store ----
    out_ref[...] = out_ref[...] + dec * wt


def _fused_call(xbig, w_cnn, b_cnn, w_emb, b_emb, w_dec, b_dec, wgt, tm):
    M, kpad = xbig.shape
    hidden = w_emb.shape[-1]
    return pl.pallas_call(
        _fused_kernel,
        out_shape=jax.ShapeDtypeStruct((M, LANES), jnp.float32),
        grid=(M // tm,),
        in_specs=[
            pl.BlockSpec((tm, kpad), lambda i: (i, 0)),
            pl.BlockSpec((kpad, LANES), lambda i: (0, 0)),
            pl.BlockSpec((1, LANES), lambda i: (0, 0)),
            pl.BlockSpec((kpad, hidden), lambda i: (0, 0)),
            pl.BlockSpec((1, hidden), lambda i: (0, 0)),
            pl.BlockSpec((hidden, LANES), lambda i: (0, 0)),
            pl.BlockSpec((1, LANES), lambda i: (0, 0)),
            pl.BlockSpec(memory_space=pltpu.MemorySpace.SMEM),   # fusion weights (2,)
        ],
        out_specs=pl.BlockSpec((tm, LANES), lambda i: (i, 0)),
        compiler_params=pltpu.CompilerParams(
            dimension_semantics=("parallel",),          # v7x: shard token tiles across 2 TCs
            vmem_limit_bytes=48 * 1024 * 1024,          # > v5e 16 MiB default, < v7x 64 MiB phys
        ),
    )(xbig, w_cnn, b_cnn, w_emb, b_emb, w_dec, b_dec, wgt)


def _choose_tile(m):
    for cand in (512, 256, 128, 64, 32, 16, 8):
        if m % cand == 0 and cand <= m:
            return cand
    raise ValueError("token count must be a multiple of 8")


# ----------------------------------------------------------------------------
# Boundary-layout glue (one-time, tiny tensors)
# ----------------------------------------------------------------------------
def _prep_input(x_nchw, p, kpad):
    """X[(n,hi,wj), (a*(p+2)+b)*C + ch] = x_pad[n, hi*p + a, wj*p + b, ch]  (halo'd token tile)."""
    N, C, H, W = x_nchw.shape
    hp, wp = H // p, W // p
    x = jnp.transpose(x_nchw, (0, 2, 3, 1))              # one NCHW->NHWC at the boundary
    xp = jnp.pad(x, ((0, 0), (1, 1), (1, 1), (0, 0)))    # conv halo
    rows = []
    for a in range(p + 2):
        cols = []
        for b in range(p + 2):
            cols.append(xp[:, a:a + (hp - 1) * p + 1:p, b:b + (wp - 1) * p + 1:p, :])
        rows.append(jnp.stack(cols, -2))                 # (N, hp, wp, p+2(b), C)
    s = jnp.stack(rows, -3)                              # (N, hp, wp, p+2(a), p+2(b), C)
    k = (p + 2) * (p + 2) * C
    xbig = s.reshape(N * hp * wp, k)
    return jnp.pad(xbig, ((0, 0), (0, kpad - k)))


def _prep_params(params, C, nc, p, hidden, kpad):
    k = (p + 2) * (p + 2) * C
    npack = p * p * nc

    # "Big" conv weight: for sub-position (di, dj), place the 3x3 kernel at halo taps
    # a = di+dh, b = dj+dw and its nc output columns at lane offset (di*p + dj)*nc.
    w3 = params["cnn"]["w_conv"].reshape(3, 3, C, nc)
    rows = []
    for di in range(p):
        cols = []
        for dj in range(p):
            cols.append(jnp.pad(w3, ((di, p - 1 - di), (dj, p - 1 - dj), (0, 0), (0, 0))))
        rows.append(jnp.stack(cols, 0))
    wb = jnp.stack(rows, 0)                                           # (p, p, p+2, p+2, C, nc)
    w_cnn = jnp.transpose(wb, (2, 3, 4, 0, 1, 5)).reshape(k, npack)   # rows (a,b,ch), cols (t,c)
    w_cnn = jnp.pad(w_cnn, ((0, kpad - k), (0, LANES - npack)))
    b_cnn = jnp.pad(jnp.tile(params["cnn"]["b_conv"], p * p),
                    (0, LANES - npack)).reshape(1, LANES)

    # Patch-embed weight lifted onto the halo'd tap grid (zero rows at halo / pad taps).
    we4 = params["trans"]["w_embed"].reshape(p, p, C, hidden)
    w_emb = jnp.pad(we4, ((1, 1), (1, 1), (0, 0), (0, 0))).reshape(k, hidden)
    w_emb = jnp.pad(w_emb, ((0, kpad - k), (0, 0)))
    b_emb = params["trans"]["b_embed"].reshape(1, hidden)

    # Decoder already has (ai, bi, class) column order == packed lane order; just pad to 128.
    w_dec = jnp.pad(params["trans"]["w_dec"], ((0, 0), (0, LANES - npack)))
    b_dec = jnp.pad(params["trans"]["b_dec"], (0, LANES - npack)).reshape(1, LANES)
    return w_cnn, b_cnn, w_emb, b_emb, w_dec, b_dec


# ----------------------------------------------------------------------------
# SimplestFusionNetwork forward
# ----------------------------------------------------------------------------
@functools.partial(jax.jit, static_argnames=("patch_size", "with_weights"))
def simplest_fusion_network(x, params, patch_size, with_weights=True):
    N, C, H, W = x.shape
    p = patch_size
    assert H % p == 0 and W % p == 0
    hp, wp = H // p, W // p
    M = N * hp * wp
    assert M % 8 == 0, "token count must be sublane-aligned for the fused kernel"
    nc = params["cnn"]["b_conv"].shape[0]
    hidden = params["trans"]["b_embed"].shape[0]
    assert p * p * nc <= LANES, "packed (di, dj, class) must fit one lane tile"
    k = (p + 2) * (p + 2) * C
    kpad = ((k + LANES - 1) // LANES) * LANES

    xbig = _prep_input(x, p, kpad)
    w_cnn, b_cnn, w_emb, b_emb, w_dec, b_dec = _prep_params(params, C, nc, p, hidden, kpad)
    if with_weights:
        wgt = jnp.concatenate([params["w_cnn"], params["w_trans"]]).astype(jnp.float32)
    else:
        wgt = jnp.ones((2,), jnp.float32)

    tm = _choose_tile(M)
    out = _fused_call(xbig, w_cnn, b_cnn, w_emb, b_emb, w_dec, b_dec, wgt, tm)

    # Packed (M, p*p*nc) -> NCHW, once at the API boundary (16x less data than the old slab).
    out = out[:, :p * p * nc].reshape(N, hp, wp, p, p, nc)
    out = jnp.transpose(out, (0, 5, 1, 3, 2, 4)).reshape(N, nc, H, W)
    return out


def init_params(key, in_channels, num_classes, patch_size, hidden):
    ks = jax.random.split(key, 8)
    p = patch_size
    return {
        "cnn": {
            "w_conv": 0.1 * jax.random.normal(ks[0], (9 * in_channels, num_classes), jnp.float32),
            "b_conv": 0.01 * jax.random.normal(ks[1], (num_classes,), jnp.float32),
        },
        "trans": {
            "w_embed": 0.1 * jax.random.normal(ks[2], (p * p * in_channels, hidden), jnp.float32),
            "b_embed": 0.01 * jax.random.normal(ks[3], (hidden,), jnp.float32),
            "w_dec": 0.1 * jax.random.normal(ks[4], (hidden, num_classes * p * p), jnp.float32),
            "b_dec": 0.01 * jax.random.normal(ks[5], (num_classes * p * p,), jnp.float32),
        },
        # nn.Parameter(torch.rand(1)) analogues
        "w_cnn": jax.random.uniform(ks[6], (1,), jnp.float32),
        "w_trans": jax.random.uniform(ks[7], (1,), jnp.float32),
    }


# ----------------------------------------------------------------------------
# Pure-JAX reference of the same stand-in forward (for the self-test)
# ----------------------------------------------------------------------------
def _reference_forward(x, params, p, with_weights=True):
    N, C, H, W = x.shape
    hp, wp = H // p, W // p
    nc = params["cnn"]["b_conv"].shape[0]
    xh = jnp.transpose(x, (0, 2, 3, 1))
    # CNN branch: 3x3 conv via im2col
    xp = jnp.pad(xh, ((0, 0), (1, 1), (1, 1), (0, 0)))
    cols = jnp.concatenate([xp[:, dh:dh + H, dw:dw + W, :]
                            for dh in range(3) for dw in range(3)], axis=-1)
    y = cols.reshape(N * H * W, 9 * C) @ params["cnn"]["w_conv"] + params["cnn"]["b_conv"]
    x_cnn = jnp.transpose(y.reshape(N, H, W, nc), (0, 3, 1, 2))
    # Transformer branch: patchify + embed(gelu) + linear decode
    t = xh.reshape(N, hp, p, wp, p, C).transpose(0, 1, 3, 2, 4, 5).reshape(N * hp * wp, p * p * C)
    emb = jax.nn.gelu(t @ params["trans"]["w_embed"] + params["trans"]["b_embed"])
    dec = emb @ params["trans"]["w_dec"] + params["trans"]["b_dec"]
    yd = dec.reshape(N, hp, wp, p, p, nc).transpose(0, 1, 3, 2, 4, 5).reshape(N, H, W, nc)
    x_trans = jnp.transpose(yd, (0, 3, 1, 2))
    if with_weights:
        x_cnn = x_cnn * params["w_cnn"]
        x_trans = x_trans * params["w_trans"]
    return jnp.mean(jnp.stack([x_cnn, x_trans]), axis=0)


if __name__ == "__main__":
    key = jax.random.PRNGKey(0)
    k_x, k_p = jax.random.split(key)

    # Small shapes consistent with the module: NCHW input, segmentation-style output.
    batch, in_channels, spatial = 2, 3, 16
    num_classes, patch_size, hidden = 4, 4, 32

    x = jax.random.normal(k_x, (batch, in_channels, spatial, spatial), jnp.float32)
    params = init_params(k_p, in_channels, num_classes, patch_size, hidden)

    out = simplest_fusion_network(x, params, patch_size, with_weights=True)
    out = jax.block_until_ready(out)

    assert out.shape == (batch, num_classes, spatial, spatial)
    assert jnp.isfinite(out).all()

    ref = _reference_forward(x, params, patch_size, with_weights=True)
    assert jnp.allclose(out, ref, atol=5e-3, rtol=5e-3), float(jnp.max(jnp.abs(out - ref)))

    print("KERNEL_OK")
</pallas_src>

<mosaic_0001>
module attributes {stable_mosaic.version = 11 : i64} {
  func.func @_fused_kernel(%arg0: i32, %arg1: memref<32x128xf32, #tpu.memory_space<vmem>>, %arg2: memref<128x128xf32, #tpu.memory_space<vmem>>, %arg3: memref<1x128xf32, #tpu.memory_space<vmem>>, %arg4: memref<128x32xf32, #tpu.memory_space<vmem>>, %arg5: memref<1x32xf32, #tpu.memory_space<vmem>>, %arg6: memref<32x128xf32, #tpu.memory_space<vmem>>, %arg7: memref<1x128xf32, #tpu.memory_space<vmem>>, %arg8: memref<2xf32, #tpu.memory_space<smem>>, %arg9: memref<32x128xf32, #tpu.memory_space<vmem>>) attributes {dimension_semantics = [#tpu.dimension_semantics<parallel>], iteration_bounds = array<i64: 1>, scalar_prefetch = 0 : i64, scratch_operands = 0 : i64, tpu.core_type = #tpu.core_type<tc>, window_params = [{transform_indices = @transform_0, window_bounds = array<i64: 32, 128>}, {pipeline_mode = #tpu.pipeline_mode<synchronous>, transform_indices = @transform_1, window_bounds = array<i64: 128, 128>}, {pipeline_mode = #tpu.pipeline_mode<synchronous>, transform_indices = @transform_2, window_bounds = array<i64: 1, 128>}, {pipeline_mode = #tpu.pipeline_mode<synchronous>, transform_indices = @transform_3, window_bounds = array<i64: 128, 32>}, {pipeline_mode = #tpu.pipeline_mode<synchronous>, transform_indices = @transform_4, window_bounds = array<i64: 1, 32>}, {pipeline_mode = #tpu.pipeline_mode<synchronous>, transform_indices = @transform_5, window_bounds = array<i64: 32, 128>}, {pipeline_mode = #tpu.pipeline_mode<synchronous>, transform_indices = @transform_6, window_bounds = array<i64: 1, 128>}, {transform_indices = @transform_7, window_bounds = array<i64: 2>}, {transform_indices = @transform_8, window_bounds = array<i64: 32, 128>}]} {
    %c0 = arith.constant 0 : index
    %0 = memref.load %arg8[%c0] : memref<2xf32, #tpu.memory_space<smem>>
    %cst = arith.constant 5.000000e-01 : f32
    %1 = arith.mulf %0, %cst : f32
    %c1 = arith.constant 1 : index
    %2 = memref.load %arg8[%c1] : memref<2xf32, #tpu.memory_space<smem>>
    %cst_0 = arith.constant 5.000000e-01 : f32
    %3 = arith.mulf %2, %cst_0 : f32
    %c0_1 = arith.constant 0 : index
    %c0_2 = arith.constant 0 : index
    %4 = vector.load %arg1[%c0_1, %c0_2] : memref<32x128xf32, #tpu.memory_space<vmem>>, vector<32x128xf32>
    %c0_3 = arith.constant 0 : index
    %c0_4 = arith.constant 0 : index
    %5 = vector.load %arg2[%c0_3, %c0_4] : memref<128x128xf32, #tpu.memory_space<vmem>>, vector<128x128xf32>
    %cst_5 = arith.constant dense<0.000000e+00> : vector<32x128xf32>
    %6 = tpu.matmul %4, %5, %cst_5 {dimension_numbers = #tpu.dot_dimension_numbers<[1], [0], [0], [1], [0, 0, 1, 1], [], []>} : vector<32x128xf32>, vector<128x128xf32>, vector<32x128xf32> -> vector<32x128xf32>
    %c0_6 = arith.constant 0 : index
    %c0_7 = arith.constant 0 : index
    %7 = vector.load %arg3[%c0_6, %c0_7] : memref<1x128xf32, #tpu.memory_space<vmem>>, vector<1x128xf32>
    %8 = vector.broadcast %7 : vector<1x128xf32> to vector<32x128xf32>
    %9 = arith.addf %6, %8 : vector<32x128xf32>
    %10 = vector.broadcast %1 : f32 to vector<32x128xf32>
    %11 = arith.mulf %9, %10 : vector<32x128xf32>
    %c0_8 = arith.constant 0 : index
    %c0_9 = arith.constant 0 : index
    %12 = vector.load %arg9[%c0_8, %c0_9] : memref<32x128xf32, #tpu.memory_space<vmem>>, vector<32x128xf32>
    tpu.vector_store %arg9[%c0_8, %c0_9], %11 {strides = array<i32>} : memref<32x128xf32, #tpu.memory_space<vmem>>, vector<32x128xf32>,
    %c0_10 = arith.constant 0 : index
    %c0_11 = arith.constant 0 : index
    %13 = vector.load %arg4[%c0_10, %c0_11] : memref<128x32xf32, #tpu.memory_space<vmem>>, vector<128x32xf32>
    %cst_12 = arith.constant dense<0.000000e+00> : vector<32x32xf32>
    %14 = tpu.matmul %4, %13, %cst_12 {dimension_numbers = #tpu.dot_dimension_numbers<[1], [0], [0], [1], [0, 0, 1, 1], [], []>} : vector<32x128xf32>, vector<128x32xf32>, vector<32x32xf32> -> vector<32x32xf32>
    %c0_13 = arith.constant 0 : index
    %c0_14 = arith.constant 0 : index
    %15 = vector.load %arg5[%c0_13, %c0_14] : memref<1x32xf32, #tpu.memory_space<vmem>>, vector<1x32xf32>
    %16 = vector.broadcast %15 : vector<1x32xf32> to vector<32x32xf32>
    %17 = arith.addf %14, %16 : vector<32x32xf32>
    %18 = arith.mulf %17, %17 : vector<32x32xf32>
    %19 = arith.mulf %17, %18 : vector<32x32xf32>
    %cst_15 = arith.constant 4.471500e-02 : f32
    %20 = vector.broadcast %cst_15 : f32 to vector<32x32xf32>
    %21 = arith.mulf %20, %19 : vector<32x32xf32>
    %22 = arith.addf %17, %21 : vector<32x32xf32>
    %cst_16 = arith.constant 0.797884583 : f32
    %23 = vector.broadcast %cst_16 : f32 to vector<32x32xf32>
    %24 = arith.mulf %23, %22 : vector<32x32xf32>
    %25 = math.tanh %24 : vector<32x32xf32>
    %cst_17 = arith.constant 1.000000e+00 : f32
    %26 = vector.broadcast %cst_17 : f32 to vector<32x32xf32>
    %27 = arith.addf %26, %25 : vector<32x32xf32>
    %cst_18 = arith.constant 5.000000e-01 : f32
    %28 = vector.broadcast %cst_18 : f32 to vector<32x32xf32>
    %29 = arith.mulf %28, %27 : vector<32x32xf32>
    %30 = arith.mulf %17, %29 : vector<32x32xf32>
    %c0_19 = arith.constant 0 : index
    %c0_20 = arith.constant 0 : index
    %31 = vector.load %arg6[%c0_19, %c0_20] : memref<32x128xf32, #tpu.memory_space<vmem>>, vector<32x128xf32>
    %cst_21 = arith.constant dense<0.000000e+00> : vector<32x128xf32>
    %32 = tpu.matmul %30, %31, %cst_21 {dimension_numbers = #tpu.dot_dimension_numbers<[1], [0], [0], [1], [0, 0, 1, 1], [], []>} : vector<32x32xf32>, vector<32x128xf32>, vector<32x128xf32> -> vector<32x128xf32>
    %c0_22 = arith.constant 0 : index
    %c0_23 = arith.constant 0 : index
    %33 = vector.load %arg7[%c0_22, %c0_23] : memref<1x128xf32, #tpu.memory_space<vmem>>, vector<1x128xf32>
    %34 = vector.broadcast %33 : vector<1x128xf32> to vector<32x128xf32>
    %35 = arith.addf %32, %34 : vector<32x128xf32>
    %c0_24 = arith.constant 0 : index
    %c0_25 = arith.constant 0 : index
    %36 = vector.load %arg9[%c0_24, %c0_25] : memref<32x128xf32, #tpu.memory_space<vmem>>, vector<32x128xf32>
    %37 = vector.broadcast %3 : f32 to vector<32x128xf32>
    %38 = arith.mulf %35, %37 : vector<32x128xf32>
    %39 = arith.addf %36, %38 : vector<32x128xf32>
    %c0_26 = arith.constant 0 : index
    %c0_27 = arith.constant 0 : index
    %40 = vector.load %arg9[%c0_26, %c0_27] : memref<32x128xf32, #tpu.memory_space<vmem>>, vector<32x128xf32>
    tpu.vector_store %arg9[%c0_26, %c0_27], %39 {strides = array<i32>} : memref<32x128xf32, #tpu.memory_space<vmem>>, vector<32x128xf32>,
    return
  }
  func.func @transform_0(%arg0: i32) -> (i32, i32) {
    %c0_i32 = arith.constant 0 : i32
    %c0_i32_0 = arith.constant 0 : i32
    return %arg0, %c0_i32 : i32, i32
  }
  func.func @transform_1(%arg0: i32) -> (i32, i32) {
    %c0_i32 = arith.constant 0 : i32
    %c0_i32_0 = arith.constant 0 : i32
    %c0_i32_1 = arith.constant 0 : i32
    return %c0_i32, %c0_i32_0 : i32, i32
  }
  func.func @transform_2(%arg0: i32) -> (i32, i32) {
    %c0_i32 = arith.constant 0 : i32
    %c0_i32_0 = arith.constant 0 : i32
    %c0_i32_1 = arith.constant 0 : i32
    return %c0_i32, %c0_i32_0 : i32, i32
  }
  func.func @transform_3(%arg0: i32) -> (i32, i32) {
    %c0_i32 = arith.constant 0 : i32
    %c0_i32_0 = arith.constant 0 : i32
    %c0_i32_1 = arith.constant 0 : i32
    return %c0_i32, %c0_i32_0 : i32, i32
  }
  func.func @transform_4(%arg0: i32) -> (i32, i32) {
    %c0_i32 = arith.constant 0 : i32
    %c0_i32_0 = arith.constant 0 : i32
    %c0_i32_1 = arith.constant 0 : i32
    return %c0_i32, %c0_i32_0 : i32, i32
  }
  func.func @transform_5(%arg0: i32) -> (i32, i32) {
    %c0_i32 = arith.constant 0 : i32
    %c0_i32_0 = arith.constant 0 : i32
    %c0_i32_1 = arith.constant 0 : i32
    return %c0_i32, %c0_i32_0 : i32, i32
  }
  func.func @transform_6(%arg0: i32) -> (i32, i32) {
    %c0_i32 = arith.constant 0 : i32
    %c0_i32_0 = arith.constant 0 : i32
    %c0_i32_1 = arith.constant 0 : i32
    return %c0_i32, %c0_i32_0 : i32, i32
  }
  func.func @transform_7(%arg0: i32) -> i32 {
    %c0_i32 = arith.constant 0 : i32
    %c0_i32_0 = arith.constant 0 : i32
    return %c0_i32 : i32
  }
  func.func @transform_8(%arg0: i32) -> (i32, i32) {
    %c0_i32 = arith.constant 0 : i32
    %c0_i32_0 = arith.constant 0 : i32
    return %arg0, %c0_i32 : i32, i32
  }
}

</mosaic_0001>

<llo_original>
// kernel: tile.8
$region0: #{tile.8}
  #allocation0 [shape = 's32[1]{0}', space=sflag, size = 0x4, scoped, tag = 'scoped memory for tile.8']
  %s0 = inlined_call_operand.vmem [shape: f32[4], index: 0, kind: input, shape index: {}]
  %s1 = inlined_call_operand.vmem [shape: f32[16,4], index: 1, kind: output, shape index: {}]
  // Predicated region
  $region2: #{tile.8} parent=0 // pred_check
    _
  $region3: #{tile.8} parent=0 // pred_check_branch
    %3 = sbr.rel (0) target = $region5
  $region4: #{tile.8} parent=0 // pred_region
    _
  $region5: #{tile.8} parent=0 // pred_fallthru
    _
  %v4 = vld [vmem:[%s0] ss:$0 sm:$0xff]
  %5 = vst [vmem:[%s1] sm:$0xff] %v4
  %s6 = scalar_lea.vmem %s1, 8
  %7 = vst [vmem:[%s6] sm:$0xff] %v4

// kernel: tile.9
$region0: #{tile.9}
  %s0 = inlined_call_operand.vmem [shape: f32[16,4], index: 0, kind: input, shape index: {}]
  %s1 = inlined_call_operand.vmem [shape: f32[64], index: 1, kind: output, shape index: {}]
  $region1: #{tile.9} parent=0
    #allocation0 [shape = 'u8[4096]{0}', space=vmem, size = 0x1000, scoped, tag = 'scoped mem for output reshape']
    %v2 = vld [vmem:[%s0] sm:$0x1]
    %vm3 = vcmask 31744
    %4 = vst.msk [vmem:[#allocation0] sm:$0x1] %vm3, %v2
    %s5 = scalar_lea.vmem %s0, 15
    %v6 = vld [vmem:[%s5] sm:$0x1]
    %7 = vrot.lane.b32.xlu0 %v6, 60
    %v8 = vpop.permute.xlu0 %7
    %vm9 = vcmask 523744
    %10 = vst.msk [vmem:[#allocation0] sm:$0x1] %vm9, %v8
    %s11 = scalar_lea.vmem %s0, 14
    %v12 = vld [vmem:[%s11] sm:$0x1]
    %13 = vrot.lane.b32.xlu0 %v12, 56
    %v14 = vpop.permute.xlu0 %13
    %vm15 = vcmask 490944
    %16 = vst.msk [vmem:[#allocation0] sm:$0x1] %vm15, %v14
    %s17 = scalar_lea.vmem %s0, 13
    %v18 = vld [vmem:[%s17] sm:$0x1]
    %19 = vrot.lane.b32.xlu0 %v18, 52
    %v20 = vpop.permute.xlu0 %19
    %vm21 = vcmask 458144
    %22 = vst.msk [vmem:[#allocation0] sm:$0x1] %vm21, %v20
    %s23 = scalar_lea.vmem %s0, 12
    %v24 = vld [vmem:[%s23] sm:$0x1]
    %25 = vrot.lane.b32.xlu0 %v24, 48
    %v26 = vpop.permute.xlu0 %25
    %vm27 = vcmask 425344
    %28 = vst.msk [vmem:[#allocation0] sm:$0x1] %vm27, %v26
    %s29 = scalar_lea.vmem %s0, 11
    %v30 = vld [vmem:[%s29] sm:$0x1]
    %31 = vrot.lane.b32.xlu0 %v30, 44
    %v32 = vpop.permute.xlu0 %31
    %vm33 = vcmask 392544
    %34 = vst.msk [vmem:[#allocation0] sm:$0x1] %vm33, %v32
    %s35 = scalar_lea.vmem %s0, 10
    %v36 = vld [vmem:[%s35] sm:$0x1]
    %37 = vrot.lane.b32.xlu0 %v36, 40
    %v38 = vpop.permute.xlu0 %37
    %vm39 = vcmask 359744
    %40 = vst.msk [vmem:[#allocation0] sm:$0x1] %vm39, %v38
    %s41 = scalar_lea.vmem %s0, 9
    %v42 = vld [vmem:[%s41] sm:$0x1]
    %43 = vrot.lane.b32.xlu0 %v42, 36
    %v44 = vpop.permute.xlu0 %43
    %vm45 = vcmask 326944
    %46 = vst.msk [vmem:[#allocation0] sm:$0x1] %vm45, %v44
    %s47 = scalar_lea.vmem %s0, 8
    %v48 = vld [vmem:[%s47] sm:$0x1]
    %49 = vrot.lane.b32.xlu0 %v48, 32
    %v50 = vpop.permute.xlu0 %49
    %vm51 = vcmask 294144
    %52 = vst.msk [vmem:[#allocation0] sm:$0x1] %vm51, %v50
    %s53 = scalar_lea.vmem %s0, 7
    %v54 = vld [vmem:[%s53] sm:$0x1]
    %55 = vrot.lane.b32.xlu0 %v54, 28
    %v56 = vpop.permute.xlu0 %55
    %vm57 = vcmask 261344
    %58 = vst.msk [vmem:[#allocation0] sm:$0x1] %vm57, %v56
    %s59 = scalar_lea.vmem %s0, 6
    %v60 = vld [vmem:[%s59] sm:$0x1]
    %61 = vrot.lane.b32.xlu0 %v60, 24
    %v62 = vpop.permute.xlu0 %61
    %vm63 = vcmask 228544
    %64 = vst.msk [vmem:[#allocation0] sm:$0x1] %vm63, %v62
    %s65 = scalar_lea.vmem %s0, 5
    %v66 = vld [vmem:[%s65] sm:$0x1]
    %67 = vrot.lane.b32.xlu0 %v66, 20
    %v68 = vpop.permute.xlu0 %67
    %vm69 = vcmask 195744
    %70 = vst.msk [vmem:[#allocation0] sm:$0x1] %vm69, %v68
    %s71 = scalar_lea.vmem %s0, 4
    %v72 = vld [vmem:[%s71] sm:$0x1]
    %73 = vrot.lane.b32.xlu0 %v72, 16
    %v74 = vpop.permute.xlu0 %73
    %vm75 = vcmask 162944
    %76 = vst.msk [vmem:[#allocation0] sm:$0x1] %vm75, %v74
    %s77 = scalar_lea.vmem %s0, 3
    %v78 = vld [vmem:[%s77] sm:$0x1]
    %79 = vrot.lane.b32.xlu0 %v78, 12
    %v80 = vpop.permute.xlu0 %79
    %vm81 = vcmask 130144
    %82 = vst.msk [vmem:[#allocation0] sm:$0x1] %vm81, %v80
    %s83 = scalar_lea.vmem %s0, 2
    %v84 = vld [vmem:[%s83] sm:$0x1]
    %85 = vrot.lane.b32.xlu0 %v84, 8
    %v86 = vpop.permute.xlu0 %85
    %vm87 = vcmask 97344
    %88 = vst.msk [vmem:[#allocation0] sm:$0x1] %vm87, %v86
    %s89 = scalar_lea.vmem %s0, 1
    %v90 = vld [vmem:[%s89] sm:$0x1]
    %91 = vrot.lane.b32.xlu0 %v90, 4
    %v92 = vpop.permute.xlu0 %91
    %vm93 = vcmask 64544
    %94 = vst.msk [vmem:[#allocation0] sm:$0x1] %vm93, %v92
    %s96 = sshllo.u32 0, 1
    %v98 = vld [vmem:[#allocation0] sm:%s96]
    %s99 = sshllo.u32 0, 1
    %100 = vst [vmem:[%s1] sm:%s99] %v98

</llo_original>
